<compile_context>
chip_gen: v6e
topology: v6e:2x2x1
jax: 0.10.0
libtpu: 0.0.40
codegen_flags: <defaults>
</compile_context>

<pallas_src>
import jax
import jax.numpy as jnp
from jax.experimental import pallas as pl
from jax.experimental.pallas import tpu as pltpu

IN_F = 50
HID_F = 100
NUM_CLASSES = 10
PAD = 128  # padded hidden/feature lane width


def ffnet_kernel(x_ref, w_ref, b_ref, out_ref):
    # x_ref: (TB, 50) f32   w_ref: (128, 384) bf16   b_ref: (3, 128) f32
    # out_ref: (TB, 10) f32
    x = x_ref[...].astype(jnp.bfloat16)  # bf16 MXU operand, f32 accumulate below

    # Layer 1: (TB,50) @ (50,128). Zero-padded weight cols keep lanes 100..127
    # of h1 at exactly 0.
    h1 = jnp.dot(x, w_ref[0:IN_F, 0:PAD],
                 preferred_element_type=jnp.float32) + b_ref[0:1, :]
    h1 = jnp.maximum(h1, 0.0)

    # Layer 2 (cast activation back to bf16 so the MXU stays on the bf16 path).
    h2 = jnp.dot(h1.astype(jnp.bfloat16), w_ref[:, PAD:2 * PAD],
                 preferred_element_type=jnp.float32) + b_ref[1:2, :]
    h2 = jnp.maximum(h2, 0.0)

    # Layer 3 -> logits. w3 padded columns are zero and b_ref[2, 10:] == -1e30,
    # so padded logit lanes are exactly -1e30 and vanish in the softmax sum.
    logits = jnp.dot(h2.astype(jnp.bfloat16), w_ref[:, 2 * PAD:3 * PAD],
                     preferred_element_type=jnp.float32) + b_ref[2:3, :]

    m = jnp.max(logits, axis=1, keepdims=True)
    shifted = logits - m
    lse = jnp.log(jnp.sum(jnp.exp(shifted), axis=1, keepdims=True))
    out_ref[...] = shifted[:, :NUM_CLASSES] - lse


def _round_up(n, m):
    return ((n + m - 1) // m) * m


def _cdiv(a, b):
    return -(-a // b)


def ffnet_forward(x, params, *, block_rows=2048):
    """x: [B, 50] float32. params: {'w_pack': [128,384] bf16, 'b_pack': [3,128] f32}."""
    w_pack = params["w_pack"]
    b_pack = params["b_pack"]

    B, F = x.shape
    assert F == IN_F

    # Batch tiling: large tiles amortize the ~0.35 us/grid-step overhead;
    # split into >= 2 steps for big batches so both v7x TensorCores are used.
    steps = max(_cdiv(B, block_rows), 1)
    if B >= 1024:
        steps = max(steps, 2)
    tb = _round_up(_cdiv(B, steps), 8)
    b_pad = steps * tb

    x_in = x if b_pad == B else jnp.pad(x, ((0, b_pad - B), (0, 0)))

    out = pl.pallas_call(
        ffnet_kernel,
        out_shape=jax.ShapeDtypeStruct((b_pad, NUM_CLASSES), jnp.float32),
        grid=(steps,),
        in_specs=[
            pl.BlockSpec((tb, IN_F), lambda i: (i, 0)),       # x tile (pipelined, raw f32)
            pl.BlockSpec((PAD, 3 * PAD), lambda i: (0, 0)),   # packed weights (resident)
            pl.BlockSpec((3, PAD), lambda i: (0, 0)),         # packed biases  (resident)
        ],
        out_specs=pl.BlockSpec((tb, NUM_CLASSES), lambda i: (i, 0)),
        compiler_params=pltpu.CompilerParams(
            dimension_semantics=("parallel",)),
    )(x_in, w_pack, b_pack)

    return out if b_pad == B else out[:B]


def init_params(key):
    """PyTorch-style init (U(-1/sqrt(fan_in), 1/sqrt(fan_in))) for
       Linear(50,100), Linear(100,100), Linear(100,10), stored transposed
       ([in, out]) and packed into a 128-padded bf16 weight slab plus an f32
       bias block. b_pack[2, 10:] carries the -1e30 class mask."""
    def linear(key, fan_in, fan_out):
        kw, kb = jax.random.split(key)
        bound = 1.0 / jnp.sqrt(jnp.float32(fan_in))
        w = jax.random.uniform(kw, (fan_in, fan_out), jnp.float32, -bound, bound)
        b = jax.random.uniform(kb, (fan_out,), jnp.float32, -bound, bound)
        return w, b

    k1, k2, k3 = jax.random.split(key, 3)
    w1, b1 = linear(k1, IN_F, HID_F)
    w2, b2 = linear(k2, HID_F, HID_F)
    w3, b3 = linear(k3, HID_F, NUM_CLASSES)

    w_pack = jnp.zeros((PAD, 3 * PAD), jnp.float32)
    w_pack = w_pack.at[:IN_F, 0 * PAD:0 * PAD + HID_F].set(w1)
    w_pack = w_pack.at[:HID_F, 1 * PAD:1 * PAD + HID_F].set(w2)
    w_pack = w_pack.at[:HID_F, 2 * PAD:2 * PAD + NUM_CLASSES].set(w3)

    b_pack = jnp.zeros((3, PAD), jnp.float32)
    b_pack = b_pack.at[0, :HID_F].set(b1)
    b_pack = b_pack.at[1, :HID_F].set(b2)
    b_pack = b_pack.at[2, :NUM_CLASSES].set(b3)
    # Class mask baked into the third bias row: padded logits become -1e30.
    b_pack = b_pack.at[2, NUM_CLASSES:].set(-1e30)

    return {"w_pack": w_pack.astype(jnp.bfloat16), "b_pack": b_pack}


def ffnet_reference(x, params):
    """Pure-JAX reference mirroring the kernel's bf16 operand rounding
       (f32 accumulation), so tolerances stay tight."""
    w_pack = params["w_pack"].astype(jnp.float32)
    b_pack = params["b_pack"]
    w1 = w_pack[:IN_F, 0 * PAD:0 * PAD + HID_F]
    w2 = w_pack[:HID_F, 1 * PAD:1 * PAD + HID_F]
    w3 = w_pack[:HID_F, 2 * PAD:2 * PAD + NUM_CLASSES]
    b1 = b_pack[0, :HID_F]
    b2 = b_pack[1, :HID_F]
    b3 = b_pack[2, :NUM_CLASSES]

    xb = x.astype(jnp.bfloat16).astype(jnp.float32)
    h1 = jnp.maximum(xb @ w1 + b1, 0.0)
    h1 = h1.astype(jnp.bfloat16).astype(jnp.float32)
    h2 = jnp.maximum(h1 @ w2 + b2, 0.0)
    h2 = h2.astype(jnp.bfloat16).astype(jnp.float32)
    logits = h2 @ w3 + b3
    return jax.nn.log_softmax(logits, axis=1)


if __name__ == "__main__":
    key = jax.random.PRNGKey(0)
    k_params, k_x = jax.random.split(key)

    params = init_params(k_params)
    batch = 8
    x = jax.random.normal(k_x, (batch, IN_F), jnp.float32)

    out = ffnet_forward(x, params)
    jax.block_until_ready(out)

    ref = ffnet_reference(x, params)
    assert out.shape == (batch, NUM_CLASSES)
    assert jnp.allclose(out, ref, atol=1e-3, rtol=1e-3), (
        float(jnp.max(jnp.abs(out - ref))))

    print("KERNEL_OK")
</pallas_src>

<mosaic_0001>
module attributes {stable_mosaic.version = 11 : i64} {
  func.func @ffnet_kernel(%arg0: i32, %arg1: memref<8x50xf32, #tpu.memory_space<vmem>>, %arg2: memref<128x384xbf16, #tpu.memory_space<vmem>>, %arg3: memref<3x128xf32, #tpu.memory_space<vmem>>, %arg4: memref<8x10xf32, #tpu.memory_space<vmem>>) attributes {dimension_semantics = [#tpu.dimension_semantics<parallel>], iteration_bounds = array<i64: 1>, scalar_prefetch = 0 : i64, scratch_operands = 0 : i64, tpu.core_type = #tpu.core_type<tc>, window_params = [{transform_indices = @transform_0, window_bounds = array<i64: 8, 50>}, {pipeline_mode = #tpu.pipeline_mode<synchronous>, transform_indices = @transform_1, window_bounds = array<i64: 128, 384>}, {pipeline_mode = #tpu.pipeline_mode<synchronous>, transform_indices = @transform_2, window_bounds = array<i64: 3, 128>}, {transform_indices = @transform_3, window_bounds = array<i64: 8, 10>}]} {
    %c0 = arith.constant 0 : index
    %c0_0 = arith.constant 0 : index
    %0 = vector.load %arg1[%c0, %c0_0] : memref<8x50xf32, #tpu.memory_space<vmem>>, vector<8x50xf32>
    %1 = arith.truncf %0 : vector<8x50xf32> to vector<8x50xbf16>
    %c0_1 = arith.constant 0 : index
    %c0_2 = arith.constant 0 : index
    %2 = vector.load %arg2[%c0_1, %c0_2] : memref<128x384xbf16, #tpu.memory_space<vmem>>, vector<50x128xbf16>
    %cst = arith.constant dense<0.000000e+00> : vector<8x128xf32>
    %3 = tpu.matmul %1, %2, %cst {dimension_numbers = #tpu.dot_dimension_numbers<[1], [0], [0], [1], [0, 0, 1, 1], [], []>} : vector<8x50xbf16>, vector<50x128xbf16>, vector<8x128xf32> -> vector<8x128xf32>
    %c0_3 = arith.constant 0 : index
    %c0_4 = arith.constant 0 : index
    %4 = vector.load %arg3[%c0_3, %c0_4] : memref<3x128xf32, #tpu.memory_space<vmem>>, vector<1x128xf32>
    %5 = vector.broadcast %4 : vector<1x128xf32> to vector<8x128xf32>
    %6 = arith.addf %3, %5 : vector<8x128xf32>
    %cst_5 = arith.constant 0.000000e+00 : f32
    %7 = vector.broadcast %cst_5 : f32 to vector<8x128xf32>
    %8 = arith.maximumf %6, %7 : vector<8x128xf32>
    %9 = arith.truncf %8 : vector<8x128xf32> to vector<8x128xbf16>
    %c0_6 = arith.constant 0 : index
    %c128 = arith.constant 128 : index
    %10 = vector.load %arg2[%c0_6, %c128] : memref<128x384xbf16, #tpu.memory_space<vmem>>, vector<128x128xbf16>
    %cst_7 = arith.constant dense<0.000000e+00> : vector<8x128xf32>
    %11 = tpu.matmul %9, %10, %cst_7 {dimension_numbers = #tpu.dot_dimension_numbers<[1], [0], [0], [1], [0, 0, 1, 1], [], []>} : vector<8x128xbf16>, vector<128x128xbf16>, vector<8x128xf32> -> vector<8x128xf32>
    %c1 = arith.constant 1 : index
    %c0_8 = arith.constant 0 : index
    %12 = vector.load %arg3[%c1, %c0_8] : memref<3x128xf32, #tpu.memory_space<vmem>>, vector<1x128xf32>
    %13 = vector.broadcast %12 : vector<1x128xf32> to vector<8x128xf32>
    %14 = arith.addf %11, %13 : vector<8x128xf32>
    %cst_9 = arith.constant 0.000000e+00 : f32
    %15 = vector.broadcast %cst_9 : f32 to vector<8x128xf32>
    %16 = arith.maximumf %14, %15 : vector<8x128xf32>
    %17 = arith.truncf %16 : vector<8x128xf32> to vector<8x128xbf16>
    %c0_10 = arith.constant 0 : index
    %c256 = arith.constant 256 : index
    %18 = vector.load %arg2[%c0_10, %c256] : memref<128x384xbf16, #tpu.memory_space<vmem>>, vector<128x128xbf16>
    %cst_11 = arith.constant dense<0.000000e+00> : vector<8x128xf32>
    %19 = tpu.matmul %17, %18, %cst_11 {dimension_numbers = #tpu.dot_dimension_numbers<[1], [0], [0], [1], [0, 0, 1, 1], [], []>} : vector<8x128xbf16>, vector<128x128xbf16>, vector<8x128xf32> -> vector<8x128xf32>
    %c2 = arith.constant 2 : index
    %c0_12 = arith.constant 0 : index
    %20 = vector.load %arg3[%c2, %c0_12] : memref<3x128xf32, #tpu.memory_space<vmem>>, vector<1x128xf32>
    %21 = vector.broadcast %20 : vector<1x128xf32> to vector<8x128xf32>
    %22 = arith.addf %19, %21 : vector<8x128xf32>
    %cst_13 = arith.constant dense<0xFF800000> : vector<8xf32>
    %23 = vector.multi_reduction <maximumf>, %22, %cst_13 [1] : vector<8x128xf32> to vector<8xf32>
    %24 = vector.shape_cast %23 : vector<8xf32> to vector<8x1xf32>
    %25 = vector.broadcast %24 : vector<8x1xf32> to vector<8x128xf32>
    %26 = arith.subf %22, %25 : vector<8x128xf32>
    %27 = math.exp %26 : vector<8x128xf32>
    %cst_14 = arith.constant dense<0.000000e+00> : vector<8xf32>
    %28 = vector.multi_reduction <add>, %27, %cst_14 [1] : vector<8x128xf32> to vector<8xf32>
    %29 = vector.shape_cast %28 : vector<8xf32> to vector<8x1xf32>
    %30 = math.log %29 : vector<8x1xf32>
    %31 = vector.extract_strided_slice %26 {offsets = [0, 0], sizes = [8, 10], strides = [1, 1]} : vector<8x128xf32> to vector<8x10xf32>
    %32 = vector.broadcast %30 : vector<8x1xf32> to vector<8x10xf32>
    %33 = arith.subf %31, %32 : vector<8x10xf32>
    %c0_15 = arith.constant 0 : index
    %c0_16 = arith.constant 0 : index
    %34 = vector.load %arg4[%c0_15, %c0_16] : memref<8x10xf32, #tpu.memory_space<vmem>>, vector<8x10xf32>
    tpu.vector_store %arg4[%c0_15, %c0_16], %33 {strides = array<i32>} : memref<8x10xf32, #tpu.memory_space<vmem>>, vector<8x10xf32>,
    return
  }
  func.func @transform_0(%arg0: i32) -> (i32, i32) {
    %c0_i32 = arith.constant 0 : i32
    %c0_i32_0 = arith.constant 0 : i32
    return %arg0, %c0_i32 : i32, i32
  }
  func.func @transform_1(%arg0: i32) -> (i32, i32) {
    %c0_i32 = arith.constant 0 : i32
    %c0_i32_0 = arith.constant 0 : i32
    %c0_i32_1 = arith.constant 0 : i32
    return %c0_i32, %c0_i32_0 : i32, i32
  }
  func.func @transform_2(%arg0: i32) -> (i32, i32) {
    %c0_i32 = arith.constant 0 : i32
    %c0_i32_0 = arith.constant 0 : i32
    %c0_i32_1 = arith.constant 0 : i32
    return %c0_i32, %c0_i32_0 : i32, i32
  }
  func.func @transform_3(%arg0: i32) -> (i32, i32) {
    %c0_i32 = arith.constant 0 : i32
    %c0_i32_0 = arith.constant 0 : i32
    return %arg0, %c0_i32 : i32, i32
  }
}

</mosaic_0001>

<llo_original>
// kernel: tpu_custom_call.1
$region0: #{tpu_custom_call.1}
  #allocation0 [shape = 'u32[]', space=smem, size = 0x4, offset = 0x4, fixed_abs, tag = 'smem constant byte address 0x4 - core index']
  #allocation1 [shape = 'u32[144,128]{1,0:T(1,128)}', space=vmem, size = 0x12000, scoped, tag = 'internal scratch']
  %s0 = inlined_call_operand.hbm [shape: f32[8,50], index: 0, kind: input, shape index: {}]
  %s1 = inlined_call_operand.hbm [shape: bf16[128,384], index: 1, kind: input, shape index: {}]
  %s2 = inlined_call_operand.hbm [shape: f32[3,128], index: 2, kind: input, shape index: {}]
  %s3 = inlined_call_operand.hbm [shape: f32[8,10], index: 3, kind: output, shape index: {}]
  %s4 = sld [smem:[#allocation0]]
  $region34: #{tpu_custom_call.1} parent=0
    _
  %s6 = ssub.s32 1, %s4
  %s7 = scalar_select 0, %s6, %s4
  $region1: #{tpu_custom_call.1} parent=0
    #allocation2 [shape = 'u8[4096]{0}', space=vmem, size = 0x1000, scoped, tag = 'input window, operand 0, single buffered']
    #allocation3 [shape = 's32[1]{0}', space=sflag, size = 0x4, scoped, tag = 'scoped memory for tpu_custom_call.1']
    #allocation4 [shape = 's32[1]{0}', space=sflag, size = 0x4, scoped, tag = 'scoped memory for tpu_custom_call.1']
    #allocation5 [shape = 'u8[98304]{0}', space=vmem, size = 0x18000, scoped, tag = 'input window, operand 1, single buffered']
    #allocation6 [shape = 's32[1]{0}', space=sflag, size = 0x4, scoped, tag = 'scoped memory for tpu_custom_call.1']
    #allocation7 [shape = 'u8[2048]{0}', space=vmem, size = 0x800, scoped, tag = 'input window, operand 2, single buffered']
    #allocation8 [shape = 'u8[4096]{0}', space=vmem, size = 0x1000, scoped, tag = 'output window, operand 0, single buffered']
    %8 = vsyncpa [#allocation3], 0
    %9 = vsyncpa [#allocation6], 0
    %10 = vsyncpa [#allocation4], 0
    // Predicated region
    $region2: #{tpu_custom_call.1} parent=1 // pred_check
      _
    $region3: #{tpu_custom_call.1} parent=1 // pred_check_branch
      %12 = sbr.rel (0) target = $region5
    $region4: #{tpu_custom_call.1} parent=1 // pred_region
      %s14 = ssub.s32 128, 128
      %15 = vsyncadd [#allocation3], %s14
      %s17 = sshll.u32 [#allocation2], 4
      %s18 = int_to_ptr.vmem [resolvable:$true] %s17
      %20 = dma.hbm_to_vmem [thread:$0]  %s0, 128, %s18, [#allocation3]
    $region5: #{tpu_custom_call.1} parent=1 // pred_fallthru
      _
    // Predicated region
    $region6: #{tpu_custom_call.1} parent=1 // pred_check
      _
    $region7: #{tpu_custom_call.1} parent=1 // pred_check_branch
      %22 = sbr.rel (0) target = $region9
    $region8: #{tpu_custom_call.1} parent=1 // pred_region
      %s24 = ssub.s32 3072, 3072
      %25 = vsyncadd [#allocation6], %s24
      %s26 = sshll.u32 [#allocation5], 4
      %s27 = int_to_ptr.vmem [resolvable:$true] %s26
      %32 = dma.hbm_to_vmem [thread:$0]  %s1, 3072, %s27, [#allocation6], 192, 192, 12
    $region9: #{tpu_custom_call.1} parent=1 // pred_fallthru
      _
    // Predicated region
    $region10: #{tpu_custom_call.1} parent=1 // pred_check
      _
    $region11: #{tpu_custom_call.1} parent=1 // pred_check_branch
      %34 = sbr.rel (0) target = $region13
    $region12: #{tpu_custom_call.1} parent=1 // pred_region
      %s36 = ssub.s32 64, 64
      %37 = vsyncadd [#allocation6], %s36
      %s39 = sshll.u32 [#allocation7], 4
      %s40 = int_to_ptr.vmem [resolvable:$true] %s39
      %42 = dma.hbm_to_vmem [thread:$0]  %s2, 64, %s40, [#allocation6]
    $region13: #{tpu_custom_call.1} parent=1 // pred_fallthru
      _
    // Predicated region
    $region14: #{tpu_custom_call.1} parent=1 // pred_check
      _
    $region15: #{tpu_custom_call.1} parent=1 // pred_check_branch
      %44 = sbr.rel (0) target = $region17
    $region16: #{tpu_custom_call.1} parent=1 // pred_region
      %45 = dma.done [#allocation3], 128
    $region17: #{tpu_custom_call.1} parent=1 // pred_fallthru
      _
    // Predicated region
    $region18: #{tpu_custom_call.1} parent=1 // pred_check
      _
    $region19: #{tpu_custom_call.1} parent=1 // pred_check_branch
      %47 = sbr.rel (0) target = $region21
    $region20: #{tpu_custom_call.1} parent=1 // pred_region
      %48 = dma.done [#allocation6], 3072
    $region21: #{tpu_custom_call.1} parent=1 // pred_fallthru
      _
    // Predicated region
    $region22: #{tpu_custom_call.1} parent=1 // pred_check
      _
    $region23: #{tpu_custom_call.1} parent=1 // pred_check_branch
      %50 = sbr.rel (0) target = $region25
    $region24: #{tpu_custom_call.1} parent=1 // pred_region
      %51 = dma.done [#allocation6], 64
    $region25: #{tpu_custom_call.1} parent=1 // pred_fallthru
      _
    %v53 = vld [vmem:[#allocation2] sm:$0xff]
    %v54 = vpack.c.bf16 %v53, %v53
    %v55 = vld [vmem:[#allocation5] sm:$0xf]
    %v56 = vld [vmem:[#allocation5 + $0xc] sm:$0xf]
    %v57 = vld [vmem:[#allocation5 + $0x18] sm:$0xf]
    %v58 = vld [vmem:[#allocation5 + $0x24] sm:$0xf]
    %v59 = vld [vmem:[#allocation5 + $0x30] sm:$0xf]
    %v60 = vld [vmem:[#allocation5 + $0x3c] sm:$0xf]
    %v61 = vld [vmem:[#allocation5 + $0x48] sm:$0x1]
    %v62 = vld [vmem:[#allocation7] sm:$0x1]
    %v63 = vlaneseq
    %v64 = vshrl.u32 %v63, 7
    %v65 = vsub.s32 0, %v64
    %v66 = vrot.slane %v62, %v65
    %v74 = vunpack.c.l.b16 %v55
    %v75 = vunpack.c.l.b16 %v56
    %v76 = vunpack.c.l.b16 %v57
    %v77 = vunpack.c.l.b16 %v58
    %v78 = vunpack.c.l.b16 %v59
    %v79 = vunpack.c.l.b16 %v60
    %v80 = vunpack.c.l.b16 %v61
    %v81 = vpack.c.b16 %v75, %v74
    %v82 = vpack.c.b16 %v77, %v76
    %v83 = vpack.c.b16 %v79, %v78
    %v84 = vpack.c.b16 %v80, %v80
    %vm88 = vcmask 408576
    %v90 = vsel %vm88, %v54, 0
    %vm92 = vcmask 1040384
    %v94 = vsel %vm92, %v84, 0
    %96 = vmatprep.subr.bf16.mxu0 0
    %97 = vmatpush1.bf16.msra.mxu0 0
    %98 = vmatprep.subr.bf16.mxu0 0
    %99 = vmatpush1.bf16.msra.mxu0 0
    %100 = vmatprep.subr.bf16.mxu0 0
    %101 = vmatpush1.bf16.msra.mxu0 0
    %102 = vmatprep.subr.bf16.mxu0 0
    %103 = vmatpush1.bf16.msra.mxu0 0
    %104 = vmatprep.subr.bf16.mxu0 0
    %105 = vmatpush1.bf16.msra.mxu0 %v94
    %106 = vmatprep.subr.bf16.mxu0 0
    %107 = vmatpush1.bf16.msra.mxu0 %v83
    %108 = vmatprep.subr.bf16.mxu0 0
    %109 = vmatpush1.bf16.msra.mxu0 %v82
    %110 = vmatprep.subr.bf16.mxu0 0
    %111 = vmatpush1.bf16.msra.mxu0 %v81
    %112 = vmatprep.subr.bf16.mxu0 0
    %113 = vmatpush2.bf16.msra.mxu0 0
    %114 = vmatprep.subr.bf16.mxu0 0
    %115 = vmatpush2.bf16.msra.mxu0 0
    %116 = vmatprep.subr.bf16.mxu0 0
    %117 = vmatpush2.bf16.msra.mxu0 0
    %118 = vmatprep.subr.bf16.mxu0 0
    %119 = vmatpush2.bf16.msra.mxu0 0
    %120 = vmatprep.subr.bf16.mxu0 0
    %121 = vmatpush2.bf16.msra.mxu0 0
    %122 = vmatprep.subr.bf16.mxu0 0
    %123 = vmatpush2.bf16.msra.mxu0 0
    %124 = vmatprep.subr.bf16.mxu0 0
    %125 = vmatpush2.bf16.msra.mxu0 0
    %126 = vmatprep.subr.bf16.mxu0 0
    %127 = vmatpush2.bf16.msra.mxu0 0
    %128 = vmatprep.mubr.bf16.mxu0 0
    %129 = vmatmul.mubr.bf16.gmra.mxu0 %v90
    %v130 = vpop.f32.mrf.mxu0
    %v131 = vadd.f32 %v66, %v130
    %v132 = vpop.f32.mrf.mxu0
    %v133 = vpop.f32.mrf.mxu0
    %v134 = vpop.f32.mrf.mxu0
    %135 = vdwg.mxu0
    %v136 = vmax.f32 %v131, 0.0
    %v137 = vpack.c.bf16 %v136, %v136
    %v138 = vld [vmem:[#allocation5 + $0x4] sm:$0xf]
    %v139 = vld [vmem:[#allocation5 + $0x10] sm:$0xf]
    %v140 = vld [vmem:[#allocation5 + $0x1c] sm:$0xf]
    %v141 = vld [vmem:[#allocation5 + $0x28] sm:$0xf]
    %v142 = vld [vmem:[#allocation5 + $0x34] sm:$0xf]
    %v143 = vld [vmem:[#allocation5 + $0x40] sm:$0xf]
    %v144 = vld [vmem:[#allocation5 + $0x4c] sm:$0xf]
    %v145 = vld [vmem:[#allocation5 + $0x58] sm:$0xf]
    %v146 = vld [vmem:[#allocation5 + $0x64] sm:$0xf]
    %v147 = vld [vmem:[#allocation5 + $0x70] sm:$0xf]
    %v148 = vld [vmem:[#allocation5 + $0x7c] sm:$0xf]
    %v149 = vld [vmem:[#allocation5 + $0x88] sm:$0xf]
    %v150 = vld [vmem:[#allocation5 + $0x94] sm:$0xf]
    %v151 = vld [vmem:[#allocation5 + $0xa0] sm:$0xf]
    %v152 = vld [vmem:[#allocation5 + $0xac] sm:$0xf]
    %v153 = vld [vmem:[#allocation5 + $0xb8] sm:$0xf]
    %v154 = vld [vmem:[#allocation7 + $0x1] sm:$0x1]
    %v155 = vlaneseq
    %v156 = vshrl.u32 %v155, 7
    %v157 = vsub.s32 0, %v156
    %v158 = vrot.slane %v154, %v157
    %v175 = vunpack.c.l.b16 %v138
    %v176 = vunpack.c.l.b16 %v139
    %v177 = vunpack.c.l.b16 %v140
    %v178 = vunpack.c.l.b16 %v141
    %v179 = vunpack.c.l.b16 %v142
    %v180 = vunpack.c.l.b16 %v143
    %v181 = vunpack.c.l.b16 %v144
    %v182 = vunpack.c.l.b16 %v145
    %v183 = vunpack.c.l.b16 %v146
    %v184 = vunpack.c.l.b16 %v147
    %v185 = vunpack.c.l.b16 %v148
    %v186 = vunpack.c.l.b16 %v149
    %v187 = vunpack.c.l.b16 %v150
    %v188 = vunpack.c.l.b16 %v151
    %v189 = vunpack.c.l.b16 %v152
    %v190 = vunpack.c.l.b16 %v153
    %v191 = vpack.c.b16 %v176, %v175
    %v192 = vpack.c.b16 %v178, %v177
    %v193 = vpack.c.b16 %v180, %v179
    %v194 = vpack.c.b16 %v182, %v181
    %v195 = vpack.c.b16 %v184, %v183
    %v196 = vpack.c.b16 %v186, %v185
    %v197 = vpack.c.b16 %v188, %v187
    %v198 = vpack.c.b16 %v190, %v189
    %207 = vmatprep.subr.bf16.mxu0 0
    %208 = vmatpush1.bf16.msra.mxu0 %v198
    %209 = vmatprep.subr.bf16.mxu0 0
    %210 = vmatpush1.bf16.msra.mxu0 %v197
    %211 = vmatprep.subr.bf16.mxu0 0
    %212 = vmatpush1.bf16.msra.mxu0 %v196
    %213 = vmatprep.subr.bf16.mxu0 0
    %214 = vmatpush1.bf16.msra.mxu0 %v195
    %215 = vmatprep.subr.bf16.mxu0 0
    %216 = vmatpush1.bf16.msra.mxu0 %v194
    %217 = vmatprep.subr.bf16.mxu0 0
    %218 = vmatpush1.bf16.msra.mxu0 %v193
    %219 = vmatprep.subr.bf16.mxu0 0
    %220 = vmatpush1.bf16.msra.mxu0 %v192
    %221 = vmatprep.subr.bf16.mxu0 0
    %222 = vmatpush1.bf16.msra.mxu0 %v191
    %223 = vmatprep.subr.bf16.mxu0 0
    %224 = vmatpush2.bf16.msra.mxu0 0
    %225 = vmatprep.subr.bf16.mxu0 0
    %226 = vmatpush2.bf16.msra.mxu0 0
    %227 = vmatprep.subr.bf16.mxu0 0
    %228 = vmatpush2.bf16.msra.mxu0 0
    %229 = vmatprep.subr.bf16.mxu0 0
    %230 = vmatpush2.bf16.msra.mxu0 0
    %231 = vmatprep.subr.bf16.mxu0 0
    %232 = vmatpush2.bf16.msra.mxu0 0
    %233 = vmatprep.subr.bf16.mxu0 0
    %234 = vmatpush2.bf16.msra.mxu0 0
    %235 = vmatprep.subr.bf16.mxu0 0
    %236 = vmatpush2.bf16.msra.mxu0 0
    %237 = vmatprep.subr.bf16.mxu0 0
    %238 = vmatpush2.bf16.msra.mxu0 0
    %239 = vmatprep.mubr.bf16.mxu0 0
    %240 = vmatmul.mubr.bf16.gmra.mxu0 %v137
    %v241 = vpop.f32.mrf.mxu0
    %v242 = vadd.f32 %v158, %v241
    %v243 = vpop.f32.mrf.mxu0
    %v244 = vpop.f32.mrf.mxu0
    %v245 = vpop.f32.mrf.mxu0
    %246 = vdwg.mxu0
    %v247 = vmax.f32 %v242, 0.0
    %v248 = vpack.c.bf16 %v247, %v247
    %v249 = vld [vmem:[#allocation5 + $0x8] sm:$0xf]
    %v250 = vld [vmem:[#allocation5 + $0x14] sm:$0xf]
    %v251 = vld [vmem:[#allocation5 + $0x20] sm:$0xf]
    %v252 = vld [vmem:[#allocation5 + $0x2c] sm:$0xf]
    %v253 = vld [vmem:[#allocation5 + $0x38] sm:$0xf]
    %v254 = vld [vmem:[#allocation5 + $0x44] sm:$0xf]
    %v255 = vld [vmem:[#allocation5 + $0x50] sm:$0xf]
    %v256 = vld [vmem:[#allocation5 + $0x5c] sm:$0xf]
    %v257 = vld [vmem:[#allocation5 + $0x68] sm:$0xf]
    %v258 = vld [vmem:[#allocation5 + $0x74] sm:$0xf]
    %v259 = vld [vmem:[#allocation5 + $0x80] sm:$0xf]
    %v260 = vld [vmem:[#allocation5 + $0x8c] sm:$0xf]
    %v261 = vld [vmem:[#allocation5 + $0x98] sm:$0xf]
    %v262 = vld [vmem:[#allocation5 + $0xa4] sm:$0xf]
    %v263 = vld [vmem:[#allocation5 + $0xb0] sm:$0xf]
    %v264 = vld [vmem:[#allocation5 + $0xbc] sm:$0xf]
    %v265 = vld [vmem:[#allocation7 + $0x2] sm:$0x1]
    %v266 = vlaneseq
    %v267 = vshrl.u32 %v266, 7
    %v268 = vsub.s32 0, %v267
    %v269 = vrot.slane %v265, %v268
    %v286 = vunpack.c.l.b16 %v249
    %v287 = vunpack.c.l.b16 %v250
    %v288 = vunpack.c.l.b16 %v251
    %v289 = vunpack.c.l.b16 %v252
    %v290 = vunpack.c.l.b16 %v253
    %v291 = vunpack.c.l.b16 %v254
    %v292 = vunpack.c.l.b16 %v255
    %v293 = vunpack.c.l.b16 %v256
    %v294 = vunpack.c.l.b16 %v257
    %v295 = vunpack.c.l.b16 %v258
    %v296 = vunpack.c.l.b16 %v259
    %v297 = vunpack.c.l.b16 %v260
    %v298 = vunpack.c.l.b16 %v261
    %v299 = vunpack.c.l.b16 %v262
    %v300 = vunpack.c.l.b16 %v263
    %v301 = vunpack.c.l.b16 %v264
    %v302 = vpack.c.b16 %v287, %v286
    %v303 = vpack.c.b16 %v289, %v288
    %v304 = vpack.c.b16 %v291, %v290
    %v305 = vpack.c.b16 %v293, %v292
    %v306 = vpack.c.b16 %v295, %v294
    %v307 = vpack.c.b16 %v297, %v296
    %v308 = vpack.c.b16 %v299, %v298
    %v309 = vpack.c.b16 %v301, %v300
    %318 = vmatprep.subr.bf16.mxu0 0
    %319 = vmatpush1.bf16.msra.mxu0 %v309
    %320 = vmatprep.subr.bf16.mxu0 0
    %321 = vmatpush1.bf16.msra.mxu0 %v308
    %322 = vmatprep.subr.bf16.mxu0 0
    %323 = vmatpush1.bf16.msra.mxu0 %v307
    %324 = vmatprep.subr.bf16.mxu0 0
    %325 = vmatpush1.bf16.msra.mxu0 %v306
    %326 = vmatprep.subr.bf16.mxu0 0
    %327 = vmatpush1.bf16.msra.mxu0 %v305
    %328 = vmatprep.subr.bf16.mxu0 0
    %329 = vmatpush1.bf16.msra.mxu0 %v304
    %330 = vmatprep.subr.bf16.mxu0 0
    %331 = vmatpush1.bf16.msra.mxu0 %v303
    %332 = vmatprep.subr.bf16.mxu0 0
    %333 = vmatpush1.bf16.msra.mxu0 %v302
    %334 = vmatprep.subr.bf16.mxu0 0
    %335 = vmatpush2.bf16.msra.mxu0 0
    %336 = vmatprep.subr.bf16.mxu0 0
    %337 = vmatpush2.bf16.msra.mxu0 0
    %338 = vmatprep.subr.bf16.mxu0 0
    %339 = vmatpush2.bf16.msra.mxu0 0
    %340 = vmatprep.subr.bf16.mxu0 0
    %341 = vmatpush2.bf16.msra.mxu0 0
    %342 = vmatprep.subr.bf16.mxu0 0
    %343 = vmatpush2.bf16.msra.mxu0 0
    %344 = vmatprep.subr.bf16.mxu0 0
    %345 = vmatpush2.bf16.msra.mxu0 0
    %346 = vmatprep.subr.bf16.mxu0 0
    %347 = vmatpush2.bf16.msra.mxu0 0
    %348 = vmatprep.subr.bf16.mxu0 0
    %349 = vmatpush2.bf16.msra.mxu0 0
    %350 = vmatprep.mubr.bf16.mxu0 0
    %351 = vmatmul.mubr.bf16.gmra.mxu0 %v248
    %v352 = vpop.f32.mrf.mxu0
    %v353 = vadd.f32 %v269, %v352
    %v354 = vpop.f32.mrf.mxu0
    %v355 = vpop.f32.mrf.mxu0
    %v356 = vpop.f32.mrf.mxu0
    %357 = vdwg.mxu0
    %358 = vmax.xlane.f32.xlu0 %v353
    %v359 = vpop.xlane.xlu0 %358
    %v360 = vsub.f32 %v353, %v359
    %v361 = vmul.f32 %v360, 1.442695
    %v362 = vpow.pop %v361
    %363 = vadd.xlane.f32.xlu0 %v362
    %v364 = vpop.xlane.xlu0 %363
    %v365 = vlog2.pop %v364
    %v366 = vmul.f32 %v365, 0.6931472
    %v367 = vsub.f32 %v360, %v366
    %vm368 = vcmask 80896
    %369 = vst.msk [vmem:[#allocation8] sm:$0xff] %vm368, %v367
    // Predicated region
    $region26: #{tpu_custom_call.1} parent=1 // pred_check
      _
    $region27: #{tpu_custom_call.1} parent=1 // pred_check_branch
      %371 = sbr.rel (0) target = $region29
    $region28: #{tpu_custom_call.1} parent=1 // pred_region
      %s373 = ssub.s32 128, 128
      %374 = vsyncadd [#allocation4], %s373
      %s376 = sshll.u32 [#allocation8], 4
      %s377 = int_to_ptr.vmem [resolvable:$true] %s376
      %379 = dma.vmem_to_hbm [thread:$0]  %s377, 128, %s3, [#allocation4]
    $region29: #{tpu_custom_call.1} parent=1 // pred_fallthru
      _
    // Predicated region
    $region30: #{tpu_custom_call.1} parent=1 // pred_check
      _
    $region31: #{tpu_custom_call.1} parent=1 // pred_check_branch
      %381 = sbr.rel (0) target = $region33
    $region32: #{tpu_custom_call.1} parent=1 // pred_region
      %382 = dma.done [#allocation4], 128
    $region33: #{tpu_custom_call.1} parent=1 // pred_fallthru
      _
    %383 = vsyncpa [#allocation3], 1
    %384 = vsyncpa [#allocation6], 1
    %385 = vsyncpa [#allocation4], 1

</llo_original>
